<compile_context>
chip_gen: v6e
topology: v6e:2x2x1
jax: 0.10.0
libtpu: 0.0.40
codegen_flags: <defaults>
</compile_context>

<pallas_src>
import functools

import jax
import jax.numpy as jnp
from jax.experimental import pallas as pl
from jax.experimental.pallas import tpu as pltpu


# ---------------------------------------------------------------------------
# Kernels
# ---------------------------------------------------------------------------
def _se_gate(pooled, w1_ref, b1_ref, w2t_ref, b2_ref):
    """Squeeze-excite MLP on the VPU/XLU (single batch element).

    pooled: (1, C) f32.  w1_ref: (Cr, C), b1_ref: (Cr, 1),
    w2t_ref: (Cr, C) (= W2^T), b2_ref: (1, C).  Returns f32 gate (1, C).
    """
    h = jnp.sum(pooled * w1_ref[...], axis=1, keepdims=True) + b1_ref[...]   # (Cr, 1)
    h = jnp.maximum(h, 0.0)
    a = jnp.sum(h * w2t_ref[...], axis=0, keepdims=True) + b2_ref[...]       # (1, C)
    return jax.nn.sigmoid(a)


def _ca_fused_kernel(x_ref, w1_ref, b1_ref, w2t_ref, b2_ref, o_ref, *, inv_s):
    # x_ref / o_ref: (1, C, S) in the native activation dtype.
    # Global average pool with f32 accumulation (first read of the block).
    pooled = jnp.sum(x_ref[...], axis=2, dtype=jnp.float32) * inv_s          # (1, C)
    gate = _se_gate(pooled, w1_ref, b1_ref, w2t_ref, b2_ref)                 # (1, C) f32
    # Re-read x from VMEM for the rescale: keeps live ranges short (no huge
    # value spanning the gate math); a VMEM re-load is free vs. the HBM DMA.
    o_ref[...] = x_ref[...] * gate.astype(o_ref.dtype)[:, :, None]


def _ca_partial_pool_kernel(x_ref, psum_ref, *, s_total):
    # Fallback pass 1: per-chunk partial channel sums over all batches.
    # x_ref: (N, C, tile_s); psum_ref: (1, N, C) f32.
    s = pl.program_id(0)
    tile_s = x_ref.shape[-1]
    x = x_ref[...]
    # Mask the out-of-bounds lanes of a ragged last chunk (OOB input block
    # contents are undefined), instead of padding x in HBM.
    rem = s_total - s * tile_s
    lane = jax.lax.broadcasted_iota(jnp.int32, (1, 1, tile_s), 2)
    xm = jnp.where(lane < rem, x, jnp.zeros_like(x))
    psum_ref[0] = jnp.sum(xm, axis=2, dtype=jnp.float32)                      # (N, C)


def _ca_gate_kernel(psum_ref, w1t_ref, b1_ref, w2t_ref, b2_ref, gate_ref, *, inv_s):
    # Tiny batched SE MLP: combine per-chunk partial sums and compute gates.
    # psum_ref: (num_chunks, N, C) f32; w1t_ref: (C, Cr); b1_ref: (1, Cr);
    # w2t_ref: (Cr, C); b2_ref: (1, C); gate_ref: (N, C) f32.
    pooled = jnp.sum(psum_ref[...], axis=0) * inv_s                           # (N, C)
    h = jnp.dot(pooled, w1t_ref[...], preferred_element_type=jnp.float32)     # (N, Cr)
    h = jnp.maximum(h + b1_ref[...], 0.0)
    a = jnp.dot(h, w2t_ref[...], preferred_element_type=jnp.float32)          # (N, C)
    gate_ref[...] = jax.nn.sigmoid(a + b2_ref[...])


def _ca_scale_kernel(x_ref, gate_ref, o_ref):
    # Fallback pass 2: y = x * gate, tile-by-tile over S (native dtype).
    g = gate_ref[0]                                                           # (1, C) f32
    o_ref[...] = x_ref[...] * g.astype(o_ref.dtype)[:, :, None]


# ---------------------------------------------------------------------------
# Wrapper
# ---------------------------------------------------------------------------
def _vmem_budget_bytes():
    cap = 64 << 20  # safe default: v7x per-TensorCore VMEM
    try:
        info = pltpu.get_tpu_info()
        reported = int(getattr(info, "vmem_capacity_bytes", 0) or 0)
        name = str(getattr(info, "chip_version", "")).lower()
        if reported > 0:
            # v7x guard: if the query reports per-chip VMEM (2 TensorCores),
            # clamp to the 64 MiB a single core can actually address.
            if ("v7" in name or "7x" in name) and reported > (64 << 20):
                reported = 64 << 20
            cap = reported
    except Exception:
        pass
    # Fixed reserve (SE weights + compiler-internal scratch) instead of the
    # previous 25% headroom -- keeps 120 MiB usable on v5e/v6e, 56 MiB on v7x.
    return max(cap - (8 << 20), 16 << 20)


def _pick_tile(S, bytes_per_lane, budget, *, bufs, max_s_tile=None):
    """Largest multiple-of-128 S tile such that `bufs` resident (.., tile)
    activation buffers fit the budget.  No divisor requirement (ragged last
    tiles are masked / clipped in-kernel); 128-lane floor only when forced."""
    t = budget // max(1, bufs * bytes_per_lane)
    t = (t // 128) * 128
    s_ceil = -(-S // 128) * 128
    t = min(t, s_ceil)
    if max_s_tile is not None:
        t = min(t, max(128, (max_s_tile // 128) * 128))
    return max(t, 128)


def ca_layer(x, w1, b1, w2, b2, *, force_two_pass=False, max_s_tile=None,
             donate_x=False):
    """CALayer forward.

    x: (N, C, D, H, W); w1: (Cr, C); b1: (Cr,); w2: (C, Cr); b2: (C,).
    donate_x=True aliases the output onto x's HBM buffer (x must be dead /
    donated by the caller afterwards).
    """
    N, C, D, H, W = x.shape
    Cr = w1.shape[0]
    S = D * H * W
    itemsize = jnp.dtype(x.dtype).itemsize
    inv_s = 1.0 / float(S)

    x_flat = x.reshape(N, C, S)
    # Weight layouts chosen so the fused kernel is pure broadcast-multiply +
    # reduce (no in-kernel transposes).
    w1_r = jnp.asarray(w1, jnp.float32)                   # (Cr, C)
    w1_t = w1_r.T                                          # (C, Cr) batched gate
    w2_t = jnp.asarray(w2, jnp.float32).T                  # (Cr, C) == W2^T
    b1_col = jnp.asarray(b1, jnp.float32).reshape(Cr, 1)
    b1_row = jnp.asarray(b1, jnp.float32).reshape(1, Cr)
    b2_row = jnp.asarray(b2, jnp.float32).reshape(1, C)

    budget = _vmem_budget_bytes()
    slab = C * S * itemsize                 # one (C, S) activation block
    misc = (1 << 20)                        # weights + slack
    alias = {0: 0} if donate_x else {}

    # --------------------------- Fused single pass ---------------------------
    if not force_two_pass:
        pipeline_mode = None
        fits = 4 * slab + misc <= budget            # in+out, double-buffered
        if not fits and 2 * slab + misc <= budget:  # in+out, single-buffered
            pipeline_mode = pl.Buffered(1)          # extends fused regime (v7x)
            fits = True
        if fits:
            if pipeline_mode is None:
                x_spec = pl.BlockSpec((1, C, S), lambda n: (n, 0, 0))
                o_spec = pl.BlockSpec((1, C, S), lambda n: (n, 0, 0))
            else:
                x_spec = pl.BlockSpec((1, C, S), lambda n: (n, 0, 0),
                                      pipeline_mode=pipeline_mode)
                o_spec = pl.BlockSpec((1, C, S), lambda n: (n, 0, 0),
                                      pipeline_mode=pipeline_mode)
            out_flat = pl.pallas_call(
                functools.partial(_ca_fused_kernel, inv_s=inv_s),
                out_shape=jax.ShapeDtypeStruct((N, C, S), x.dtype),
                grid_spec=pltpu.PrefetchScalarGridSpec(
                    num_scalar_prefetch=0,
                    grid=(N,),
                    in_specs=[
                        x_spec,                                        # x (per batch)
                        pl.BlockSpec((Cr, C), lambda n: (0, 0)),       # W1
                        pl.BlockSpec((Cr, 1), lambda n: (0, 0)),       # b1
                        pl.BlockSpec((Cr, C), lambda n: (0, 0)),       # W2^T
                        pl.BlockSpec((1, C), lambda n: (0, 0)),        # b2
                    ],
                    out_specs=o_spec,
                ),
                compiler_params=pltpu.CompilerParams(
                    dimension_semantics=("parallel",),
                    vmem_limit_bytes=budget,
                ),
                input_output_aliases=alias,
            )(x_flat, w1_r, b1_col, w2_t, b2_row)
            return out_flat.reshape(N, C, D, H, W)

    # ------------------ Tiled two-pass fallback (large C * S) ------------------
    # Pass 1: per-chunk partial channel sums.  Grid over S chunks only (the x
    # block covers all N), so both v7x TensorCores have work even when N == 1.
    # Pass 1 has no large output block -> its tile is ~2x the pass-2 tile.
    tile1 = _pick_tile(S, N * C * itemsize, budget, bufs=2, max_s_tile=max_s_tile)
    n1 = pl.cdiv(S, tile1)
    psums = pl.pallas_call(
        functools.partial(_ca_partial_pool_kernel, s_total=S),
        out_shape=jax.ShapeDtypeStruct((n1, N, C), jnp.float32),
        grid_spec=pltpu.PrefetchScalarGridSpec(
            num_scalar_prefetch=0,
            grid=(n1,),
            in_specs=[pl.BlockSpec((N, C, tile1), lambda s: (0, 0, s))],
            out_specs=pl.BlockSpec((1, N, C), lambda s: (s, 0, 0)),
        ),
        compiler_params=pltpu.CompilerParams(
            dimension_semantics=("parallel",),
            vmem_limit_bytes=budget,
        ),
    )(x_flat)

    # Tiny gate step: combine partial sums + SE MLP (negligible traffic).
    gates = pl.pallas_call(
        functools.partial(_ca_gate_kernel, inv_s=inv_s),
        out_shape=jax.ShapeDtypeStruct((N, C), jnp.float32),
    )(psums, w1_t, b1_row, w2_t, b2_row)
    gates3 = gates.reshape(N, 1, C)

    # Pass 2: y = x * gate, fully parallel over (N, S chunks).  Ragged last
    # tile: Pallas clips the partial output block, no padding / slicing needed.
    tile2 = _pick_tile(S, C * itemsize, budget, bufs=4, max_s_tile=max_s_tile)
    n2 = pl.cdiv(S, tile2)
    out_flat = pl.pallas_call(
        _ca_scale_kernel,
        out_shape=jax.ShapeDtypeStruct((N, C, S), x.dtype),
        grid_spec=pltpu.PrefetchScalarGridSpec(
            num_scalar_prefetch=0,
            grid=(N, n2),
            in_specs=[
                pl.BlockSpec((1, C, tile2), lambda n, s: (n, 0, s)),
                pl.BlockSpec((1, 1, C), lambda n, s: (n, 0, 0)),
            ],
            out_specs=pl.BlockSpec((1, C, tile2), lambda n, s: (n, 0, s)),
        ),
        compiler_params=pltpu.CompilerParams(
            dimension_semantics=("parallel", "parallel"),
            vmem_limit_bytes=budget,
        ),
        input_output_aliases=alias,
    )(x_flat, gates3)
    return out_flat.reshape(N, C, D, H, W)


def ca_layer_ref(x, w1, b1, w2, b2):
    """Pure-JAX reference of the PyTorch forward."""
    pooled = jnp.mean(x, axis=(2, 3, 4))              # (N, C)
    h = jnp.maximum(pooled @ w1.T + b1, 0.0)          # (N, Cr)
    a = jax.nn.sigmoid(h @ w2.T + b2)                 # (N, C)
    return x * a[:, :, None, None, None]


if __name__ == "__main__":
    # Small shapes: N=2, C=32, reduction=16 -> Cr=2.
    N, C, reduction = 2, 32, 16
    Cr = C // reduction

    key = jax.random.PRNGKey(0)
    kx, kw1, kb1, kw2, kb2 = jax.random.split(key, 5)
    w1 = jax.random.normal(kw1, (Cr, C), dtype=jnp.float32) * 0.1
    b1 = jax.random.normal(kb1, (Cr,), dtype=jnp.float32) * 0.1
    w2 = jax.random.normal(kw2, (C, Cr), dtype=jnp.float32) * 0.1
    b2 = jax.random.normal(kb2, (C,), dtype=jnp.float32) * 0.1

    # Two spatial shapes: S=256 (tiles divide S) and S=192 (ragged last tile,
    # exercising the in-kernel mask / clipped-store path of the fallback).
    for (D, H, W) in [(4, 8, 8), (3, 8, 8)]:
        x = jax.random.normal(kx, (N, C, D, H, W), dtype=jnp.float32)
        ref = ca_layer_ref(x, w1, b1, w2, b2)

        # Fused single-pass path (chosen automatically for these shapes).
        out1 = jax.block_until_ready(ca_layer(x, w1, b1, w2, b2))
        assert out1.shape == x.shape and out1.dtype == x.dtype
        assert jnp.allclose(out1, ref, atol=1e-5, rtol=1e-5), "fused path mismatch"

        # Tiled two-pass fallback, forced with small tiles so multiple S chunks
        # (and the ragged last chunk) are exercised.
        out2 = jax.block_until_ready(
            ca_layer(x, w1, b1, w2, b2, force_two_pass=True, max_s_tile=128))
        assert out2.shape == x.shape and out2.dtype == x.dtype
        assert jnp.allclose(out2, ref, atol=1e-5, rtol=1e-5), "two-pass path mismatch"

    print("KERNEL_OK")
</pallas_src>

<mosaic_0001>
module attributes {stable_mosaic.version = 11 : i64} {
  func.func @_ca_fused_kernel(%arg0: i32, %arg1: memref<1x32x256xf32, #tpu.memory_space<vmem>>, %arg2: memref<2x32xf32, #tpu.memory_space<vmem>>, %arg3: memref<2x1xf32, #tpu.memory_space<vmem>>, %arg4: memref<2x32xf32, #tpu.memory_space<vmem>>, %arg5: memref<1x32xf32, #tpu.memory_space<vmem>>, %arg6: memref<1x32x256xf32, #tpu.memory_space<vmem>>) attributes {dimension_semantics = [#tpu.dimension_semantics<parallel>], iteration_bounds = array<i64: 2>, scalar_prefetch = 0 : i64, scratch_operands = 0 : i64, tpu.core_type = #tpu.core_type<tc>, window_params = [{transform_indices = @transform_0, window_bounds = array<i64: 1, 32, 256>}, {pipeline_mode = #tpu.pipeline_mode<synchronous>, transform_indices = @transform_1, window_bounds = array<i64: 2, 32>}, {pipeline_mode = #tpu.pipeline_mode<synchronous>, transform_indices = @transform_2, window_bounds = array<i64: 2, 1>}, {pipeline_mode = #tpu.pipeline_mode<synchronous>, transform_indices = @transform_3, window_bounds = array<i64: 2, 32>}, {pipeline_mode = #tpu.pipeline_mode<synchronous>, transform_indices = @transform_4, window_bounds = array<i64: 1, 32>}, {transform_indices = @transform_5, window_bounds = array<i64: 1, 32, 256>}]} {
    %c0 = arith.constant 0 : index
    %c0_0 = arith.constant 0 : index
    %c0_1 = arith.constant 0 : index
    %0 = vector.load %arg1[%c0, %c0_0, %c0_1] : memref<1x32x256xf32, #tpu.memory_space<vmem>>, vector<1x32x256xf32>
    %cst = arith.constant dense<0.000000e+00> : vector<1x32xf32>
    %1 = vector.multi_reduction <add>, %0, %cst [2] : vector<1x32x256xf32> to vector<1x32xf32>
    %cst_2 = arith.constant 3.906250e-03 : f32
    %2 = vector.broadcast %cst_2 : f32 to vector<1x32xf32>
    %3 = arith.mulf %1, %2 : vector<1x32xf32>
    %c0_3 = arith.constant 0 : index
    %c0_4 = arith.constant 0 : index
    %4 = vector.load %arg2[%c0_3, %c0_4] : memref<2x32xf32, #tpu.memory_space<vmem>>, vector<2x32xf32>
    %5 = vector.broadcast %3 : vector<1x32xf32> to vector<2x32xf32>
    %6 = arith.mulf %5, %4 : vector<2x32xf32>
    %cst_5 = arith.constant dense<0.000000e+00> : vector<2xf32>
    %7 = vector.multi_reduction <add>, %6, %cst_5 [1] : vector<2x32xf32> to vector<2xf32>
    %8 = vector.shape_cast %7 : vector<2xf32> to vector<2x1xf32>
    %c0_6 = arith.constant 0 : index
    %c0_7 = arith.constant 0 : index
    %9 = vector.load %arg3[%c0_6, %c0_7] : memref<2x1xf32, #tpu.memory_space<vmem>>, vector<2x1xf32>
    %10 = arith.addf %8, %9 : vector<2x1xf32>
    %cst_8 = arith.constant 0.000000e+00 : f32
    %11 = vector.broadcast %cst_8 : f32 to vector<2x1xf32>
    %12 = arith.maximumf %10, %11 : vector<2x1xf32>
    %c0_9 = arith.constant 0 : index
    %c0_10 = arith.constant 0 : index
    %13 = vector.load %arg4[%c0_9, %c0_10] : memref<2x32xf32, #tpu.memory_space<vmem>>, vector<2x32xf32>
    %14 = vector.broadcast %12 : vector<2x1xf32> to vector<2x32xf32>
    %15 = arith.mulf %14, %13 : vector<2x32xf32>
    %cst_11 = arith.constant dense<0.000000e+00> : vector<32xf32>
    %16 = vector.multi_reduction <add>, %15, %cst_11 [0] : vector<2x32xf32> to vector<32xf32>
    %17 = vector.shape_cast %16 : vector<32xf32> to vector<1x32xf32>
    %c0_12 = arith.constant 0 : index
    %c0_13 = arith.constant 0 : index
    %18 = vector.load %arg5[%c0_12, %c0_13] : memref<1x32xf32, #tpu.memory_space<vmem>>, vector<1x32xf32>
    %19 = arith.addf %17, %18 : vector<1x32xf32>
    %20 = arith.negf %19 : vector<1x32xf32>
    %21 = math.exp %20 : vector<1x32xf32>
    %cst_14 = arith.constant 1.000000e+00 : f32
    %22 = vector.broadcast %cst_14 : f32 to vector<1x32xf32>
    %23 = arith.addf %22, %21 : vector<1x32xf32>
    %24 = arith.divf %22, %23 : vector<1x32xf32>
    %c0_15 = arith.constant 0 : index
    %c0_16 = arith.constant 0 : index
    %c0_17 = arith.constant 0 : index
    %25 = vector.load %arg1[%c0_15, %c0_16, %c0_17] : memref<1x32x256xf32, #tpu.memory_space<vmem>>, vector<1x32x256xf32>
    %26 = vector.shape_cast %24 : vector<1x32xf32> to vector<1x32x1xf32>
    %27 = vector.broadcast %26 : vector<1x32x1xf32> to vector<1x32x256xf32>
    %28 = arith.mulf %25, %27 : vector<1x32x256xf32>
    %c0_18 = arith.constant 0 : index
    %c0_19 = arith.constant 0 : index
    %c0_20 = arith.constant 0 : index
    %29 = vector.load %arg6[%c0_18, %c0_19, %c0_20] : memref<1x32x256xf32, #tpu.memory_space<vmem>>, vector<1x32x256xf32>
    tpu.vector_store %arg6[%c0_18, %c0_19, %c0_20], %28 {strides = array<i32>} : memref<1x32x256xf32, #tpu.memory_space<vmem>>, vector<1x32x256xf32>,
    return
  }
  func.func @transform_0(%arg0: i32) -> (i32, i32, i32) {
    %c0_i32 = arith.constant 0 : i32
    %c0_i32_0 = arith.constant 0 : i32
    %c0_i32_1 = arith.constant 0 : i32
    return %arg0, %c0_i32, %c0_i32_0 : i32, i32, i32
  }
  func.func @transform_1(%arg0: i32) -> (i32, i32) {
    %c0_i32 = arith.constant 0 : i32
    %c0_i32_0 = arith.constant 0 : i32
    %c0_i32_1 = arith.constant 0 : i32
    return %c0_i32, %c0_i32_0 : i32, i32
  }
  func.func @transform_2(%arg0: i32) -> (i32, i32) {
    %c0_i32 = arith.constant 0 : i32
    %c0_i32_0 = arith.constant 0 : i32
    %c0_i32_1 = arith.constant 0 : i32
    return %c0_i32, %c0_i32_0 : i32, i32
  }
  func.func @transform_3(%arg0: i32) -> (i32, i32) {
    %c0_i32 = arith.constant 0 : i32
    %c0_i32_0 = arith.constant 0 : i32
    %c0_i32_1 = arith.constant 0 : i32
    return %c0_i32, %c0_i32_0 : i32, i32
  }
  func.func @transform_4(%arg0: i32) -> (i32, i32) {
    %c0_i32 = arith.constant 0 : i32
    %c0_i32_0 = arith.constant 0 : i32
    %c0_i32_1 = arith.constant 0 : i32
    return %c0_i32, %c0_i32_0 : i32, i32
  }
  func.func @transform_5(%arg0: i32) -> (i32, i32, i32) {
    %c0_i32 = arith.constant 0 : i32
    %c0_i32_0 = arith.constant 0 : i32
    %c0_i32_1 = arith.constant 0 : i32
    return %arg0, %c0_i32, %c0_i32_0 : i32, i32, i32
  }
}

</mosaic_0001>

<llo_original>
// kernel: tpu_custom_call.1
$region0: #{tpu_custom_call.1}
  #allocation0 [shape = 'u32[]', space=smem, size = 0x4, offset = 0x4, fixed_abs, tag = 'smem constant byte address 0x4 - core index']
  #allocation1 [shape = 'u32[144,128]{1,0:T(1,128)}', space=vmem, size = 0x12000, scoped, tag = 'internal scratch']
  %s0 = inlined_call_operand.hbm [shape: f32[2,32,256], index: 0, kind: input, shape index: {}]
  %s1 = inlined_call_operand.vmem [shape: f32[2,32], index: 1, kind: input, shape index: {}]
  %s2 = inlined_call_operand.vmem [shape: f32[2,1], index: 2, kind: input, shape index: {}]
  %s3 = inlined_call_operand.vmem [shape: f32[2,32], index: 3, kind: input, shape index: {}]
  %s4 = inlined_call_operand.vmem [shape: f32[1,32], index: 4, kind: input, shape index: {}]
  %s5 = inlined_call_operand.hbm [shape: f32[2,32,256], index: 5, kind: output, shape index: {}]
  %s6 = sld [smem:[#allocation0]]
  $region57: #{tpu_custom_call.1} parent=0
    _
  %s8 = ssub.s32 1, %s6
  %s9 = scalar_select 0, %s8, %s6
  $region1: #{tpu_custom_call.1} parent=0
    #allocation2 [shape = 'u8[65536]{0}', space=vmem, size = 0x10000, scoped, tag = 'input window, operand 0']
    #allocation3 [shape = 's32[2]{0}', space=sflag, size = 0x8, scoped, tag = 'scoped memory for tpu_custom_call.1']
    #allocation4 [shape = 's32[2]{0}', space=sflag, size = 0x8, scoped, tag = 'scoped memory for tpu_custom_call.1']
    #allocation5 [shape = 'u8[65536]{0}', space=vmem, size = 0x10000, scoped, tag = 'output window, operand 0']
    %10 = vsyncpa [#allocation3], 0
    %s11 = scalar_lea.sflag [#allocation3], 1
    %12 = vsyncpa %s11, 0
    %13 = vsyncpa [#allocation4], 0
    %s14 = scalar_lea.sflag [#allocation4], 1
    %15 = vsyncpa %s14, 0
    loop: start=0, step=1, limit=4
    $region2: #{tpu_custom_call.1} parent=1 // loop_pre_header
      _
    $region3: #{tpu_custom_call.1} parent=1 // loop_header
      %s17 = sphi 0, %s21
      %p18 = scmp.ge.s32.totalorder %s17, 4
      %s27 = sphi 0, %s29
      %s30 = sphi 0, %s27
      %s31 = sphi 0, %s30
      %s47 = sphi 0, %s31
      %s51 = sphi 0, %s51
      %s53 = sphi 0, %s51
      %s54 = sphi 0, %s53
      %s68 = sphi 0, %s54
      %s72 = sphi 0, %s72
      %s74 = sphi 0, %s72
      %s75 = sphi 0, %s74
      %s89 = sphi 0, %s75
      %s93 = sphi 0, %s93
      %s95 = sphi 0, %s93
      %s96 = sphi 0, %s95
      %s110 = sphi 0, %s96
      %s114 = sphi 0, %s114
      %s116 = sphi 0, %s114
      %s117 = sphi 0, %s116
      %s131 = sphi 0, %s117
      %s137 = sphi 0, %s139
      %s140 = sphi 0, %s137
      %s141 = sphi 0, %s140
      %s157 = sphi 0, %s141
    $region4: #{tpu_custom_call.1} parent=1 // loop_header_branch
      %20 = sbr.rel (%p18) target = $region8
    $region5: #{tpu_custom_call.1} parent=1 // loop_body
      %s22 = ssub.s32 %s17, 1
      %s23 = ssub.s32 %s17, 2
      %s24 = sadd.s32 %s17, 1
      %s25 = ssub.s32 %s17, %s24
      %p26 = scmp.eq.s32.totalorder %s25, 0
      %s28 = sadd.s32 %s27, 1
      %s29 = scalar_select %p26, %s27, %s28
      %p32 = pneg %p26
      %p33 = scmp.eq.s32.totalorder %s17, 1
      %p34 = por %p32, %p33
      %p35 = scmp.ne.s32.totalorder %s27, %s30
      %p36 = scmp.eq.s32.totalorder %s17, 0
      %p37 = por %p35, %p36
      %p38 = scmp.ne.s32.totalorder %s27, %s30
      %p39 = scmp.eq.s32.totalorder %s22, 1
      %p40 = por %p38, %p39
      %p41 = scmp.ne.s32.totalorder %s30, %s31
      %p42 = scmp.eq.s32.totalorder %s22, 0
      %p43 = por %p41, %p42
      %p44 = scmp.ne.s32.totalorder %s30, %s31
      %p45 = scmp.eq.s32.totalorder %s23, 1
      %p46 = por %p44, %p45
      %p48 = scmp.ne.s32.totalorder %s31, %s47
      %p49 = scmp.eq.s32.totalorder %s23, 0
      %p50 = por %p48, %p49
      %s52 = sadd.s32 %s51, 1
      %p55 = scmp.eq.s32.totalorder %s17, 1
      %p56 = scmp.ne.s32.totalorder %s51, %s53
      %p57 = scmp.eq.s32.totalorder %s17, 0
      %p58 = por %p56, %p57
      %p59 = scmp.ne.s32.totalorder %s51, %s53
      %p60 = scmp.eq.s32.totalorder %s22, 1
      %p61 = por %p59, %p60
      %p62 = scmp.ne.s32.totalorder %s53, %s54
      %p63 = scmp.eq.s32.totalorder %s22, 0
      %p64 = por %p62, %p63
      %p65 = scmp.ne.s32.totalorder %s53, %s54
      %p66 = scmp.eq.s32.totalorder %s23, 1
      %p67 = por %p65, %p66
      %p69 = scmp.ne.s32.totalorder %s54, %s68
      %p70 = scmp.eq.s32.totalorder %s23, 0
      %p71 = por %p69, %p70
      %s73 = sadd.s32 %s72, 1
      %p76 = scmp.eq.s32.totalorder %s17, 1
      %p77 = scmp.ne.s32.totalorder %s72, %s74
      %p78 = scmp.eq.s32.totalorder %s17, 0
      %p79 = por %p77, %p78
      %p80 = scmp.ne.s32.totalorder %s72, %s74
      %p81 = scmp.eq.s32.totalorder %s22, 1
      %p82 = por %p80, %p81
      %p83 = scmp.ne.s32.totalorder %s74, %s75
      %p84 = scmp.eq.s32.totalorder %s22, 0
      %p85 = por %p83, %p84
      %p86 = scmp.ne.s32.totalorder %s74, %s75
      %p87 = scmp.eq.s32.totalorder %s23, 1
      %p88 = por %p86, %p87
      %p90 = scmp.ne.s32.totalorder %s75, %s89
      %p91 = scmp.eq.s32.totalorder %s23, 0
      %p92 = por %p90, %p91
      %s94 = sadd.s32 %s93, 1
      %p97 = scmp.eq.s32.totalorder %s17, 1
      %p98 = scmp.ne.s32.totalorder %s93, %s95
      %p99 = scmp.eq.s32.totalorder %s17, 0
      %p100 = por %p98, %p99
      %p101 = scmp.ne.s32.totalorder %s93, %s95
      %p102 = scmp.eq.s32.totalorder %s22, 1
      %p103 = por %p101, %p102
      %p104 = scmp.ne.s32.totalorder %s95, %s96
      %p105 = scmp.eq.s32.totalorder %s22, 0
      %p106 = por %p104, %p105
      %p107 = scmp.ne.s32.totalorder %s95, %s96
      %p108 = scmp.eq.s32.totalorder %s23, 1
      %p109 = por %p107, %p108
      %p111 = scmp.ne.s32.totalorder %s96, %s110
      %p112 = scmp.eq.s32.totalorder %s23, 0
      %p113 = por %p111, %p112
      %s115 = sadd.s32 %s114, 1
      %p118 = scmp.eq.s32.totalorder %s17, 1
      %p119 = scmp.ne.s32.totalorder %s114, %s116
      %p120 = scmp.eq.s32.totalorder %s17, 0
      %p121 = por %p119, %p120
      %p122 = scmp.ne.s32.totalorder %s114, %s116
      %p123 = scmp.eq.s32.totalorder %s22, 1
      %p124 = por %p122, %p123
      %p125 = scmp.ne.s32.totalorder %s116, %s117
      %p126 = scmp.eq.s32.totalorder %s22, 0
      %p127 = por %p125, %p126
      %p128 = scmp.ne.s32.totalorder %s116, %s117
      %p129 = scmp.eq.s32.totalorder %s23, 1
      %p130 = por %p128, %p129
      %p132 = scmp.ne.s32.totalorder %s117, %s131
      %p133 = scmp.eq.s32.totalorder %s23, 0
      %p134 = por %p132, %p133
      %s135 = ssub.s32 %s17, %s24
      %p136 = scmp.eq.s32.totalorder %s135, 0
      %s138 = sadd.s32 %s137, 1
      %s139 = scalar_select %p136, %s137, %s138
      %p142 = pneg %p136
      %p143 = scmp.eq.s32.totalorder %s17, 1
      %p144 = por %p142, %p143
      %p145 = scmp.ne.s32.totalorder %s137, %s140
      %p146 = scmp.eq.s32.totalorder %s17, 0
      %p147 = por %p145, %p146
      %p148 = scmp.ne.s32.totalorder %s137, %s140
      %p149 = scmp.eq.s32.totalorder %s22, 1
      %p150 = por %p148, %p149
      %p151 = scmp.ne.s32.totalorder %s140, %s141
      %p152 = scmp.eq.s32.totalorder %s22, 0
      %p153 = por %p151, %p152
      %p154 = scmp.ne.s32.totalorder %s140, %s141
      %p155 = scmp.eq.s32.totalorder %s23, 1
      %p156 = por %p154, %p155
      %p158 = scmp.ne.s32.totalorder %s141, %s157
      %p159 = scmp.eq.s32.totalorder %s23, 0
      %p160 = por %p158, %p159
      %p161 = scmp.le.s32.totalorder 1, %s17
      %p162 = scmp.lt.s32.totalorder %s17, 3
      %p163 = pnand %p161, %p162
      %p164 = pneg %p163
      // Predicated region
      $region9: #{tpu_custom_call.1} parent=5 // pred_check
        _
      $region10: #{tpu_custom_call.1} parent=5 // pred_check_branch
        %166 = sbr.rel (%p163) target = $region12
      $region11: #{tpu_custom_call.1} parent=5 // pred_region
        %s167 = ssub.s32 %s17, 1
        // Predicated region
        $region13: #{tpu_custom_call.1} parent=11 // pred_check
          %p168 = pneg %p64
        $region14: #{tpu_custom_call.1} parent=11 // pred_check_branch
          %170 = sbr.rel (%p168) target = $region16
        $region15: #{tpu_custom_call.1} parent=11 // pred_region
          _
        $region16: #{tpu_custom_call.1} parent=11 // pred_fallthru
          _
        // Predicated region
        $region17: #{tpu_custom_call.1} parent=11 // pred_check
          %p171 = pneg %p85
        $region18: #{tpu_custom_call.1} parent=11 // pred_check_branch
          %173 = sbr.rel (%p171) target = $region20
        $region19: #{tpu_custom_call.1} parent=11 // pred_region
          _
        $region20: #{tpu_custom_call.1} parent=11 // pred_fallthru
          _
        // Predicated region
        $region21: #{tpu_custom_call.1} parent=11 // pred_check
          %p174 = pneg %p106
        $region22: #{tpu_custom_call.1} parent=11 // pred_check_branch
          %176 = sbr.rel (%p174) target = $region24
        $region23: #{tpu_custom_call.1} parent=11 // pred_region
          _
        $region24: #{tpu_custom_call.1} parent=11 // pred_fallthru
          _
        // Predicated region
        $region25: #{tpu_custom_call.1} parent=11 // pred_check
          %p177 = pneg %p127
        $region26: #{tpu_custom_call.1} parent=11 // pred_check_branch
          %179 = sbr.rel (%p177) target = $region28
        $region27: #{tpu_custom_call.1} parent=11 // pred_region
          _
        $region28: #{tpu_custom_call.1} parent=11 // pred_fallthru
          _
      $region12: #{tpu_custom_call.1} parent=5 // pred_fallthru
        _
      %p180 = scmp.lt.s32.totalorder %s17, 2
      // Predicated region
      $region29: #{tpu_custom_call.1} parent=5 // pred_check
        %p181 = pneg %p180
      $region30: #{tpu_custom_call.1} parent=5 // pred_check_branch
        %183 = sbr.rel (%p181) target = $region32
      $region31: #{tpu_custom_call.1} parent=5 // pred_region
        // Predicated region
        $region33: #{tpu_custom_call.1} parent=31 // pred_check
          %p184 = pneg %p37
        $region34: #{tpu_custom_call.1} parent=31 // pred_check_branch
          %186 = sbr.rel (%p184) target = $region36
        $region35: #{tpu_custom_call.1} parent=31 // pred_region
          %s187 = sand.u32 %s27, 1
          %s188 = scalar_lea.sflag [#allocation3], %s187
          %s189 = sand.u32 %s27, 1
          %s190 = smul.addr %s189, 64
          %s191 = scalar_lea.vmem [#allocation2], %s190
          %s193 = ssub.s32 1024, 1024
          %194 = vsyncadd %s188, %s193
          %s195 = smul.addr %s17, 8
          %s196 = smul.addr %s195, 128
          %s197 = scalar_lea.hbm %s0, %s196
          %s198 = sshll.u32 %s191, 4
          %s199 = int_to_ptr.vmem [resolvable:$true] %s198
          %204 = dma.hbm_to_vmem [thread:$0]  %s197, 1024, %s199, %s188, 256, 256, 16
        $region36: #{tpu_custom_call.1} parent=31 // pred_fallthru
          _
      $region32: #{tpu_custom_call.1} parent=5 // pred_fallthru
        _
      %p205 = scmp.le.s32.totalorder 1, %s17
      %p206 = scmp.lt.s32.totalorder %s17, 3
      %p207 = pnand %p205, %p206
      %p208 = pneg %p207
      // Predicated region
      $region37: #{tpu_custom_call.1} parent=5 // pred_check
        _
      $region38: #{tpu_custom_call.1} parent=5 // pred_check_branch
        %210 = sbr.rel (%p207) target = $region40
      $region39: #{tpu_custom_call.1} parent=5 // pred_region
        %s211 = ssub.s32 %s17, 1
        %s212 = sand.u32 %s30, 1
        %s213 = scalar_lea.sflag [#allocation3], %s212
        %s214 = sand.u32 %s30, 1
        %s215 = smul.addr %s214, 64
        %s216 = scalar_lea.vmem [#allocation2], %s215
        // Predicated region
        $region41: #{tpu_custom_call.1} parent=39 // pred_check
          %p217 = pneg %p43
        $region42: #{tpu_custom_call.1} parent=39 // pred_check_branch
          %219 = sbr.rel (%p217) target = $region44
        $region43: #{tpu_custom_call.1} parent=39 // pred_region
          %220 = dma.done %s213, 1024
        $region44: #{tpu_custom_call.1} parent=39 // pred_fallthru
          _
        %s221 = sand.u32 %s30, 1
        %s222 = scalar_lea.sflag [#allocation3], %s221
        %s223 = sand.u32 %s30, 1
        %s224 = smul.addr %s223, 64
        %s225 = scalar_lea.vmem [#allocation2], %s224
        %p226 = pneg %p43
        %p227 = pneg %p40
        %p228 = pneg %p64
        %p229 = pneg %p61
        %p230 = pneg %p85
        %p231 = pneg %p82
        %p232 = pneg %p106
        %p233 = pneg %p103
        %p234 = pneg %p127
        %p235 = pneg %p124
        %p236 = pneg %p153
        %p237 = pneg %p150
        %s238 = sand.u32 %s140, 1
        %s239 = scalar_lea.sflag [#allocation4], %s238
        %s240 = sand.u32 %s140, 1
        %s241 = smul.addr %s240, 64
        %s242 = scalar_lea.vmem [#allocation5], %s241
        %v243 = vld [vmem:[%s216] sm:$0xff]
        %v244 = vld [vmem:[%s216 + $0x8] sm:$0xff]
        %v245 = vld [vmem:[%s216 + $0x10] sm:$0xff]
        %v246 = vld [vmem:[%s216 + $0x18] sm:$0xff]
        %v247 = vld [vmem:[%s216 + $0x20] sm:$0xff]
        %v248 = vld [vmem:[%s216 + $0x28] sm:$0xff]
        %v249 = vld [vmem:[%s216 + $0x30] sm:$0xff]
        %v250 = vld [vmem:[%s216 + $0x38] sm:$0xff]
        %v251 = vadd.f32 %v243, %v244
        %252 = vadd.xlane.f32.xlu0 %v251
        %v253 = vpop.xlane.xlu0 %252
        %v254 = vadd.f32 %v245, %v246
        %255 = vadd.xlane.f32.xlu0 %v254
        %v256 = vpop.xlane.xlu0 %255
        %v257 = vadd.f32 %v247, %v248
        %258 = vadd.xlane.f32.xlu0 %v257
        %v259 = vpop.xlane.xlu0 %258
        %v260 = vadd.f32 %v249, %v250
        %261 = vadd.xlane.f32.xlu0 %v260
        %v262 = vpop.xlane.xlu0 %261
        %v263 = vmul.f32 %v253, 0.00390625
        %v264 = vmul.f32 %v256, 0.00390625
        %v265 = vmul.f32 %v259, 0.00390625
        %v266 = vmul.f32 %v262, 0.00390625
        %v267 = vld [vmem:[%s1] sm:$0x3]
        %v269 = vlaneseq
        %v270 = vshrl.u32 %v269, 7
        %v271 = vsub.s32 0, %v270
        %v272 = vrot.slane %v267, %v271
        %274 = vbcast.lane.b32.xlu0 %v272, 256
        %v275 = vpop.permute.xlu0 %274
        %s277 = sor.u32 256, 8
        %278 = vbcast.lane.b32.xlu0 %v272, %s277
        %v279 = vpop.permute.xlu0 %278
        %s281 = sor.u32 256, 16
        %282 = vbcast.lane.b32.xlu0 %v272, %s281
        %v283 = vpop.permute.xlu0 %282
        %s285 = sor.u32 256, 24
        %286 = vbcast.lane.b32.xlu0 %v272, %s285
        %v287 = vpop.permute.xlu0 %286
        %v288 = vlaneseq
        %v289 = vshrl.u32 %v288, 7
        %v290 = vsub.s32 1, %v289
        %v291 = vrot.slane %v267, %v290
        %293 = vbcast.lane.b32.xlu0 %v291, 256
        %v294 = vpop.permute.xlu0 %293
        %s296 = sor.u32 256, 8
        %297 = vbcast.lane.b32.xlu0 %v291, %s296
        %v298 = vpop.permute.xlu0 %297
        %s300 = sor.u32 256, 16
        %301 = vbcast.lane.b32.xlu0 %v291, %s300
        %v302 = vpop.permute.xlu0 %301
        %s304 = sor.u32 256, 24
        %305 = vbcast.lane.b32.xlu0 %v291, %s304
        %v306 = vpop.permute.xlu0 %305
        %v315 = vmul.f32 %v263, %v275
        %v316 = vmul.f32 %v264, %v279
        %v317 = vmul.f32 %v265, %v283
        %v318 = vmul.f32 %v266, %v287
        %v319 = vmul.f32 %v263, %v294
        %v320 = vmul.f32 %v264, %v298
        %v321 = vmul.f32 %v265, %v302
        %v322 = vmul.f32 %v266, %v306
        %331 = vset.pattern.permute.xlu0 0
        %332 = vperm.xlu0 %331, %v315
        %v333 = vpop.permute.xlu0 %332
        %334 = vset.pattern.permute.xlu0 0
        %335 = vperm.xlu0 %334, %v316
        %v336 = vpop.permute.xlu0 %335
        %337 = vset.pattern.permute.xlu0 0
        %338 = vperm.xlu0 %337, %v317
        %v339 = vpop.permute.xlu0 %338
        %340 = vset.pattern.permute.xlu0 0
        %341 = vperm.xlu0 %340, %v318
        %v342 = vpop.permute.xlu0 %341
        %343 = vset.pattern.permute.xlu0 0
        %344 = vperm.xlu0 %343, %v319
        %v345 = vpop.permute.xlu0 %344
        %346 = vset.pattern.permute.xlu0 0
        %347 = vperm.xlu0 %346, %v320
        %v348 = vpop.permute.xlu0 %347
        %349 = vset.pattern.permute.xlu0 0
        %350 = vperm.xlu0 %349, %v321
        %v351 = vpop.permute.xlu0 %350
        %352 = vset.pattern.permute.xlu0 0
        %353 = vperm.xlu0 %352, %v322
        %v354 = vpop.permute.xlu0 %353
        %v355 = vlaneseq
        %v356 = vand.u32 %v355, 127
        %v357 = vlaneseq
        %v358 = vshrl.u32 %v357, 7
        %v359 = vsub.s32 %v356, %v358
        %v360 = vrot.slane %v333, %v359
        %v361 = vadd.s32 %v356, 4294967288
        %v362 = vlaneseq
        %v363 = vshrl.u32 %v362, 7
        %v364 = vsub.s32 %v361, %v363
        %v365 = vrot.slane %v336, %v364
        %vm366 = vcmask 130112
        %v367 = vsel %vm366, %v365, %v360
        %v368 = vadd.s32 %v356, 4294967280
        %v369 = vlaneseq
        %v370 = vshrl.u32 %v369, 7
        %v371 = vsub.s32 %v368, %v370
        %v372 = vrot.slane %v339, %v371
        %vm373 = vcmask 195712
        %v374 = vsel %vm373, %v372, %v367
        %v375 = vadd.s32 %v356, 4294967272
        %v376 = vlaneseq
        %v377 = vshrl.u32 %v376, 7
        %v378 = vsub.s32 %v375, %v377
        %v379 = vrot.slane %v342, %v378
        %vm380 = vcmask 261312
        %v381 = vsel %vm380, %v379, %v374
        %v382 = vlaneseq
        %v383 = vshrl.u32 %v382, 7
        %v384 = vsub.s32 %v356, %v383
        %v385 = vrot.slane %v345, %v384
        %v386 = vlaneseq
        %v387 = vshrl.u32 %v386, 7
        %v388 = vsub.s32 %v361, %v387
        %v389 = vrot.slane %v348, %v388
        %v390 = vsel %vm366, %v389, %v385
        %v391 = vlaneseq
        %v392 = vshrl.u32 %v391, 7
        %v393 = vsub.s32 %v368, %v392
        %v394 = vrot.slane %v351, %v393
        %v395 = vsel %vm373, %v394, %v390
        %v396 = vlaneseq
        %v397 = vshrl.u32 %v396, 7
        %v398 = vsub.s32 %v375, %v397
        %v399 = vrot.slane %v354, %v398
        %v400 = vsel %vm380, %v399, %v395
        %vm401 = vcmask 1041409
        %v402 = vsel %vm401, %v400, %v381
        %vm404 = vcmask 254976
        %v405 = vsel %vm404, %v402, 0.0
        %406 = vadd.xlane.f32.xlu0 %v405
        %v407 = vpop.xlane.xlu0 %406
        %v408 = vld [vmem:[%s2] sm:$0x3]
        %v409 = vadd.f32 %v407, %v408
        %v410 = vmax.f32 %v409, 0.0
        %v411 = vld [vmem:[%s3] sm:$0x3]
        %413 = vset.pattern.permute.xlu0 0
        %414 = vperm.xlu0 %413, %v410
        %v415 = vpop.permute.xlu0 %414
        %v417 = vmul.f32 %v415, %v411
        %v418 = vsel %vm404, %v417, 0.0
        %v419 = vrot.slane %v418, 4
        %v420 = vadd.f32 %v418, %v419
        %v421 = vrot.slane %v420, 2
        %v422 = vadd.f32 %v420, %v421
        %v423 = vrot.slane %v422, 1
        %v424 = vadd.f32 %v422, %v423
        %v425 = vld [vmem:[%s4] sm:$0x1]
        %v426 = vadd.f32 %v424, %v425
        %v427 = vxor.u32 %v426, 2147483648
        %v428 = vmul.f32 %v427, 1.442695
        %v429 = vpow.pop %v428
        %v430 = vadd.f32 %v429, 1.0
        %v431 = vrcp.pop %v430
        %v432 = vmul.f32 1.0, %v431
        %v433 = vlaneseq
        %v434 = vshrl.u32 %v433, 7
        %v435 = vsub.s32 0, %v434
        %v436 = vrot.slane %v432, %v435
        %438 = vbcast.lane.b32.xlu0 %v436, 256
        %v439 = vpop.permute.xlu0 %438
        %s441 = sor.u32 256, 8
        %442 = vbcast.lane.b32.xlu0 %v436, %s441
        %v443 = vpop.permute.xlu0 %442
        %s445 = sor.u32 256, 16
        %446 = vbcast.lane.b32.xlu0 %v436, %s445
        %v447 = vpop.permute.xlu0 %446
        %s449 = sor.u32 256, 24
        %450 = vbcast.lane.b32.xlu0 %v436, %s449
        %v451 = vpop.permute.xlu0 %450
        %v452 = vmul.f32 %v243, %v439
        %v453 = vmul.f32 %v244, %v439
        %v454 = vmul.f32 %v245, %v443
        %v455 = vmul.f32 %v246, %v443
        %v456 = vmul.f32 %v247, %v447
        %v457 = vmul.f32 %v248, %v447
        %v458 = vmul.f32 %v249, %v451
        %v459 = vmul.f32 %v250, %v451
        %460 = vst [vmem:[%s242] sm:$0xff] %v452
        %461 = vst [vmem:[%s242 + $0x8] sm:$0xff] %v453
        %462 = vst [vmem:[%s242 + $0x10] sm:$0xff] %v454
        %463 = vst [vmem:[%s242 + $0x18] sm:$0xff] %v455
        %464 = vst [vmem:[%s242 + $0x20] sm:$0xff] %v456
        %465 = vst [vmem:[%s242 + $0x28] sm:$0xff] %v457
        %466 = vst [vmem:[%s242 + $0x30] sm:$0xff] %v458
        %467 = vst [vmem:[%s242 + $0x38] sm:$0xff] %v459
        %s468 = sand.u32 %s140, 1
        %s469 = scalar_lea.sflag [#allocation4], %s468
        %s470 = sand.u32 %s140, 1
        %s471 = smul.addr %s470, 64
        %s472 = scalar_lea.vmem [#allocation5], %s471
        // Predicated region
        $region45: #{tpu_custom_call.1} parent=39 // pred_check
          %p473 = pneg %p150
        $region46: #{tpu_custom_call.1} parent=39 // pred_check_branch
          %475 = sbr.rel (%p473) target = $region48
        $region47: #{tpu_custom_call.1} parent=39 // pred_region
          %s477 = ssub.s32 1024, 1024
          %478 = vsyncadd %s469, %s477
          %s479 = smul.addr %s22, 8
          %s480 = smul.addr %s479, 128
          %s481 = scalar_lea.hbm %s5, %s480
          %s482 = sshll.u32 %s472, 4
          %s483 = int_to_ptr.vmem [resolvable:$true] %s482
          %488 = dma.vmem_to_hbm [thread:$0]  %s483, 1024, %s481, %s469, 256, 256, 16
        $region48: #{tpu_custom_call.1} parent=39 // pred_fallthru
          _
      $region40: #{tpu_custom_call.1} parent=5 // pred_fallthru
        _
      %p489 = scmp.le.s32.totalorder 2, %s17
      // Predicated region
      $region49: #{tpu_custom_call.1} parent=5 // pred_check
        %p490 = pneg %p489
      $region50: #{tpu_custom_call.1} parent=5 // pred_check_branch
        %492 = sbr.rel (%p490) target = $region52
      $region51: #{tpu_custom_call.1} parent=5 // pred_region
        %s493 = ssub.s32 %s17, 2
        // Predicated region
        $region53: #{tpu_custom_call.1} parent=51 // pred_check
          %p494 = pneg %p156
        $region54: #{tpu_custom_call.1} parent=51 // pred_check_branch
          %496 = sbr.rel (%p494) target = $region56
        $region55: #{tpu_custom_call.1} parent=51 // pred_region
          %s497 = sand.u32 %s141, 1
          %s498 = scalar_lea.sflag [#allocation4], %s497
          %s499 = sand.u32 %s141, 1
          %s500 = smul.addr %s499, 64
          %s501 = scalar_lea.vmem [#allocation5], %s500
          %502 = dma.done %s498, 1024
        $region56: #{tpu_custom_call.1} parent=51 // pred_fallthru
          _
      $region52: #{tpu_custom_call.1} parent=5 // pred_fallthru
        _
    $region6: #{tpu_custom_call.1} parent=1 // loop_footer
      %s21 = sadd.s32 1, %s17
    $region7: #{tpu_custom_call.1} parent=1 // loop_footer_branch
      %16 = sbr.rel target = $region3
    $region8: #{tpu_custom_call.1} parent=1 // loop_exit
      _
    %503 = vsyncpa [#allocation3], 1
    %s504 = scalar_lea.sflag [#allocation3], 1
    %505 = vsyncpa %s504, 1
    %506 = vsyncpa [#allocation4], 1
    %s507 = scalar_lea.sflag [#allocation4], 1
    %508 = vsyncpa %s507, 1

</llo_original>
